<compile_context>
chip_gen: v5e
topology: v5e:2x2
jax: 0.10.0
libtpu: 0.0.40
codegen_flags: <defaults>
</compile_context>

<pallas_src>
import functools

import jax
import jax.numpy as jnp
from jax.experimental import pallas as pl
from jax.experimental.pallas import tpu as pltpu

_LANE = 128  # TPU lane width: last dim of every slab
_SUBLANE = 8  # f32 sublane granule


def _make_cos_kernel(a, b, c):
    """Build an elementwise kernel with a/b/c folded at trace time."""
    a0, a1 = float(a[0]), float(a[1])
    b0, b1 = float(b[0]), float(b[1])
    c = float(c)

    def kernel(x_ref, y_ref, o_ref):
        # Pure elementwise VPU/EUP work on lane-dense (tile_rows, 128) tiles.
        x = x_ref[...]
        y = y_ref[...]
        arg_x = x * b0 if b0 != 1.0 else x
        arg_y = y * b1 if b1 != 1.0 else y
        if c != 0.0:
            arg_y = arg_y + c
        vx = jnp.cos(arg_x)
        vy = jnp.cos(arg_y)
        if a0 != 1.0:
            vx = vx * a0
        if a1 != 1.0:
            vy = vy * a1
        o_ref[...] = vx + vy

    return kernel


@functools.partial(jax.jit, static_argnames=("a", "b", "c", "tile_rows"))
def cos_energy(r, *, a=(1.0, 1.0), b=(-2.0, 1.0), c=0.0, tile_rows=2048):
    """Pallas TPU equivalent of COS.forward(r). r: (N, 2) -> (N,)."""
    n = r.shape[0]

    # Deinterleave columns; all of this fuses under the surrounding jit.
    # TODO(synk): an in-kernel deinterleave of an interleaved (rows, 256) slab
    # (lane-strided load / XLU roll) would cut wrapper copy traffic further.
    x = r[:, 0]
    y = r[:, 1]
    if x.dtype != jnp.float32:
        x = x.astype(jnp.float32)
        y = y.astype(jnp.float32)

    # Lane-dense slab geometry: pad N only up to a whole (8, 128) slab.
    rows_needed = pl.cdiv(n, _LANE)
    rows8 = pl.cdiv(rows_needed, _SUBLANE) * _SUBLANE
    padded_n = rows8 * _LANE

    if padded_n != n:
        pad = (0, padded_n - n)
        x = jnp.pad(x, pad)
        y = jnp.pad(y, pad)

    x2 = x.reshape(rows8, _LANE)
    y2 = y.reshape(rows8, _LANE)

    # Effective tile rows: multiple of 8, capped at the data size so small
    # inputs stay single-tile.  Ragged last block is clipped by Pallas.
    tr = min(int(tile_rows), rows8)
    tr = max(_SUBLANE, (tr // _SUBLANE) * _SUBLANE)
    grid = (pl.cdiv(rows8, tr),)
    block = pl.BlockSpec((tr, _LANE), lambda i: (i, 0))

    kernel = _make_cos_kernel(a, b, c)

    out2 = pl.pallas_call(
        kernel,
        out_shape=jax.ShapeDtypeStruct((rows8, _LANE), jnp.float32),
        grid=grid,
        in_specs=[block, block],
        out_specs=block,
        compiler_params=pltpu.CompilerParams(
            dimension_semantics=("parallel",),
        ),
        cost_estimate=pl.CostEstimate(
            flops=2 * padded_n,
            transcendentals=2 * padded_n,
            bytes_accessed=12 * padded_n,
        ),
    )(x2, y2)

    return out2.reshape(padded_n)[:n]


def cos_energy_ref(r, a=(1.0, 1.0), b=(-2.0, 1.0), c=0.0):
    """Plain-JAX reference for correctness checking (original unfused form)."""
    x = r[:, 0]
    y = r[:, 1]
    return a[0] * jnp.cos(b[0] * x) + a[1] * jnp.cos(b[1] * y + c)


if __name__ == "__main__":
    key = jax.random.PRNGKey(0)

    # Small deterministic input consistent with the module: N=60 points with
    # x in [0, 6] and y in [0, 12] (matching the module's linspace ranges).
    n = 60
    kx, ky = jax.random.split(key)
    x = jax.random.uniform(kx, (n,), minval=0.0, maxval=6.0, dtype=jnp.float32)
    y = jax.random.uniform(ky, (n,), minval=0.0, maxval=12.0, dtype=jnp.float32)
    r = jnp.stack([x, y], axis=1)  # (N, 2)

    out = jax.block_until_ready(cos_energy(r))
    ref = cos_energy_ref(r)
    assert out.shape == (n,), f"bad shape {out.shape}"
    assert jnp.allclose(out, ref, atol=1e-5, rtol=1e-5), "mismatch vs reference"

    # Exercise the multi-tile grid and ragged-last-block path at a still-small
    # shape (rows8=24, tr=16 -> grid=(2,), second block clipped).
    n2 = 2500
    r2 = jax.random.uniform(key, (n2, 2), minval=-4.0, maxval=4.0,
                            dtype=jnp.float32)
    out2 = jax.block_until_ready(cos_energy(r2, tile_rows=16))
    ref2 = cos_energy_ref(r2)
    assert out2.shape == (n2,), f"bad shape {out2.shape}"
    assert jnp.allclose(out2, ref2, atol=1e-5, rtol=1e-5), "ragged-tile mismatch"

    print("KERNEL_OK")
</pallas_src>

<mosaic_0001>
module attributes {stable_mosaic.version = 11 : i64} {
  func.func @kernel(%arg0: i32, %arg1: memref<8x128xf32, #tpu.memory_space<vmem>>, %arg2: memref<8x128xf32, #tpu.memory_space<vmem>>, %arg3: memref<8x128xf32, #tpu.memory_space<vmem>>) attributes {dimension_semantics = [#tpu.dimension_semantics<parallel>], iteration_bounds = array<i64: 1>, scalar_prefetch = 0 : i64, scratch_operands = 0 : i64, tpu.core_type = #tpu.core_type<tc>, window_params = [{transform_indices = @transform_0, window_bounds = array<i64: 8, 128>}, {transform_indices = @transform_1, window_bounds = array<i64: 8, 128>}, {transform_indices = @transform_2, window_bounds = array<i64: 8, 128>}]} {
    %c0 = arith.constant 0 : index
    %c0_0 = arith.constant 0 : index
    %0 = vector.load %arg1[%c0, %c0_0] : memref<8x128xf32, #tpu.memory_space<vmem>>, vector<8x128xf32>
    %c0_1 = arith.constant 0 : index
    %c0_2 = arith.constant 0 : index
    %1 = vector.load %arg2[%c0_1, %c0_2] : memref<8x128xf32, #tpu.memory_space<vmem>>, vector<8x128xf32>
    %cst = arith.constant -2.000000e+00 : f32
    %2 = vector.broadcast %cst : f32 to vector<8x128xf32>
    %3 = arith.mulf %0, %2 : vector<8x128xf32>
    %4 = math.cos %3 : vector<8x128xf32>
    %5 = math.cos %1 : vector<8x128xf32>
    %6 = arith.addf %4, %5 : vector<8x128xf32>
    %c0_3 = arith.constant 0 : index
    %c0_4 = arith.constant 0 : index
    %7 = vector.load %arg3[%c0_3, %c0_4] : memref<8x128xf32, #tpu.memory_space<vmem>>, vector<8x128xf32>
    tpu.vector_store %arg3[%c0_3, %c0_4], %6 {strides = array<i32>} : memref<8x128xf32, #tpu.memory_space<vmem>>, vector<8x128xf32>,
    return
  }
  func.func @transform_0(%arg0: i32) -> (i32, i32) {
    %c0_i32 = arith.constant 0 : i32
    %c0_i32_0 = arith.constant 0 : i32
    return %arg0, %c0_i32 : i32, i32
  }
  func.func @transform_1(%arg0: i32) -> (i32, i32) {
    %c0_i32 = arith.constant 0 : i32
    %c0_i32_0 = arith.constant 0 : i32
    return %arg0, %c0_i32 : i32, i32
  }
  func.func @transform_2(%arg0: i32) -> (i32, i32) {
    %c0_i32 = arith.constant 0 : i32
    %c0_i32_0 = arith.constant 0 : i32
    return %arg0, %c0_i32 : i32, i32
  }
}

</mosaic_0001>

<llo_original>
// kernel: cos_energy.1
$region0: #{cos_energy.1}
  #allocation0 [shape = 'u32[]', space=smem, size = 0x4, offset = 0x4, fixed_abs, tag = 'smem constant byte address 0x4 - core index']
  #allocation1 [shape = 'u32[72,128]{1,0:T(1,128)}', space=vmem, size = 0x9000, scoped, tag = 'internal scratch']
  %s0 = inlined_call_operand.vmem [shape: f32[8,128], index: 0, kind: input, shape index: {}]
  %s1 = inlined_call_operand.vmem [shape: f32[8,128], index: 1, kind: input, shape index: {}]
  %s2 = inlined_call_operand.vmem [shape: f32[8,128], index: 2, kind: output, shape index: {}]
  %s3 = sld [smem:[#allocation0]]
  $region18: #{cos_energy.1} parent=0
    _
  %s5 = ssub.s32 1, %s3
  %s6 = scalar_select 0, %s5, %s3
  // Predicated region
  $region2: #{cos_energy.1} parent=0 // pred_check
    _
  $region3: #{cos_energy.1} parent=0 // pred_check_branch
    %8 = sbr.rel (0) target = $region5
  $region4: #{cos_energy.1} parent=0 // pred_region
    _
  $region5: #{cos_energy.1} parent=0 // pred_fallthru
    _
  // Predicated region
  $region6: #{cos_energy.1} parent=0 // pred_check
    _
  $region7: #{cos_energy.1} parent=0 // pred_check_branch
    %10 = sbr.rel (0) target = $region9
  $region8: #{cos_energy.1} parent=0 // pred_region
    _
  $region9: #{cos_energy.1} parent=0 // pred_fallthru
    _
  %v11 = vld [vmem:[%s0] sm:$0xff]
  %v12 = vld [vmem:[%s1] sm:$0xff]
  %v13 = vmul.f32 %v11, -2.0
  %v14 = vand.u32 2147483647, %v13
  %vm15 = vcmp.le.f32.partialorder %v14, 0.7853982
  %vm16 = vcmp.lt.s32.totalorder %v13, 0
  %v17 = vand.u32 %v13, 2139095040
  %v18 = vshrl.u32 %v17, 23
  %v19 = vsub.s32 %v18, 127
  %v20 = vand.u32 2147483647, %v13
  %v21 = vand.u32 %v20, 8388607
  %v22 = vor.u32 %v21, 8388608
  %v23 = vsub.s32 0, %v22
  %v24 = vadd.s32 %v19, 1
  %vm25 = vcmp.gt.s32.totalorder %v24, 0
  %v26 = vsel %vm25, %v24, 0
  %v27 = vshrl.u32 %v26, 5
  %v28 = vand.u32 %v26, 31
  %v29 = vsub.s32 32, %v28
  %v30 = vshrl.u32 683565275, %v29
  %v31 = vshll.u32 683565275, %v28
  %v32 = vshrl.u32 2475754826, %v29
  %v33 = vor.u32 %v31, %v32
  %v34 = vshll.u32 2475754826, %v28
  %v35 = vshrl.u32 2131351028, %v29
  %v36 = vor.u32 %v34, %v35
  %v37 = vshll.u32 2131351028, %v28
  %v38 = vshrl.u32 2102212464, %v29
  %v39 = vor.u32 %v37, %v38
  %v40 = vshll.u32 2102212464, %v28
  %v41 = vshrl.u32 920167782, %v29
  %v42 = vor.u32 %v40, %v41
  %v43 = vshll.u32 920167782, %v28
  %v44 = vshrl.u32 1326507024, %v29
  %v45 = vor.u32 %v43, %v44
  %vm46 = vcmp.lt.s32.totalorder %v27, 1
  %vm47 = vcmp.lt.s32.totalorder %v27, 2
  %vm48 = vcmp.lt.s32.totalorder %v27, 3
  %vm49 = vcmp.lt.s32.totalorder %v27, 4
  %v50 = vsel %vm46, %v30, %v33
  %v51 = vsel %vm49, %v39, 2102212464
  %v52 = vsel %vm48, %v36, %v51
  %v53 = vsel %vm47, %v50, %v52
  %v54 = vsel %vm46, %v33, %v36
  %v55 = vsel %vm49, %v42, 920167782
  %v56 = vsel %vm48, %v39, %v55
  %v57 = vsel %vm47, %v54, %v56
  %v58 = vsel %vm46, %v36, %v39
  %v59 = vsel %vm49, %v45, 1326507024
  %v60 = vsel %vm48, %v42, %v59
  %v61 = vsel %vm47, %v58, %v60
  %v62 = vshll.u32 %v22, 8
  %v63 = vand.u32 %v62, 65535
  %v64 = vshrl.u32 %v62, 16
  %v65 = vand.u32 %v61, 65535
  %v66 = vshrl.u32 %v61, 16
  %v67 = vmul.u32 %v63, %v65
  %v68 = vmul.u32 %v63, %v66
  %v69 = vmul.u32 %v64, %v65
  %v70 = vmul.u32 %v64, %v66
  %v71 = vshll.u32 %v68, 16
  %v72 = vshrl.u32 %v68, 16
  %v73 = vshll.u32 %v69, 16
  %v74 = vshrl.u32 %v69, 16
  %vm75 = vc.u32 %v67, %v71
  %v76 = vsel %vm75, 1, 0
  %v77 = vadd.s32 %v67, %v71
  %v78 = vadd.s32 %v70, %v76
  %vm79 = vc.u32 %v77, %v73
  %v80 = vsel %vm79, 1, 0
  %v81 = vadd.s32 %v77, %v73
  %v82 = vadd.s32 %v78, %v80
  %v83 = vadd.s32 %v82, %v72
  %v84 = vadd.s32 %v83, %v74
  %v85 = vand.u32 %v62, 65535
  %v86 = vshrl.u32 %v62, 16
  %v87 = vand.u32 %v57, 65535
  %v88 = vshrl.u32 %v57, 16
  %v89 = vmul.u32 %v85, %v87
  %v90 = vmul.u32 %v85, %v88
  %v91 = vmul.u32 %v86, %v87
  %v92 = vmul.u32 %v86, %v88
  %v93 = vshll.u32 %v90, 16
  %v94 = vshrl.u32 %v90, 16
  %v95 = vshll.u32 %v91, 16
  %v96 = vshrl.u32 %v91, 16
  %vm97 = vc.u32 %v89, %v93
  %v98 = vsel %vm97, 1, 0
  %v99 = vadd.s32 %v89, %v93
  %v100 = vadd.s32 %v92, %v98
  %vm101 = vc.u32 %v99, %v95
  %v102 = vsel %vm101, 1, 0
  %v103 = vadd.s32 %v99, %v95
  %v104 = vadd.s32 %v100, %v102
  %v105 = vadd.s32 %v104, %v94
  %v106 = vadd.s32 %v105, %v96
  %v107 = vmul.u32 %v62, %v53
  %v108 = vadd.s32 %v84, %v103
  %vm109 = vc.u32 %v84, %v103
  %v110 = vadd.s32 %v106, 1
  %v111 = vsel %vm109, %v110, %v106
  %v112 = vadd.s32 %v107, %v111
  %v113 = vadd.s32 %v112, 536870912
  %v114 = vshrl.u32 %v113, 30
  %v115 = vshll.u32 %v114, 30
  %v116 = vsub.s32 %v112, %v115
  %vm117 = vcmp.lt.s32.totalorder %v116, 0
  %v118 = vsub.s32 0, %v116
  %v119 = vsel %vm117, %v118, %v116
  %v120 = vclz %v119
  %v121 = vsub.s32 %v120, 2
  %vm122 = vcmp.gt.s32.totalorder 0, %v121
  %v123 = vsel %vm122, 0, %v121
  %v124 = vsub.s32 32, %v123
  %v125 = vshll.u32 %v116, %v123
  %v126 = vshrl.u32 %v108, %v124
  %v127 = vor.u32 %v125, %v126
  %v128 = vsub.s32 4294967266, %v123
  %v129 = vadd.s32 %v128, 127
  %v130 = vshll.u32 %v129, 23
  %v131 = vor.u32 4788187, %v130
  %v132 = vand.u32 2147483647, %v131
  %v134 = vcvt.s32.f32 %v127
  %v135 = vmul.f32 %v134, %v132
  %v136 = vxor.u32 %v135, 2147483648
  %v137 = vsel %vm16, %v136, %v135
  %v138 = vsub.s32 4, %v114
  %v139 = vsel %vm16, %v138, %v114
  %v140 = vsel %vm15, %v13, %v137
  %v141 = vsel %vm15, 0, %v139
  %v142 = vmul.f32 %v140, %v140
  %v143 = vmul.f32 %v142, -0.001358992
  %v144 = vadd.f32 %v143, 0.041655596
  %v145 = vmul.f32 %v142, %v144
  %v146 = vadd.f32 %v145, -0.4999988
  %v147 = vmul.f32 %v142, %v146
  %v148 = vadd.f32 1.0, %v147
  %v149 = vmul.f32 %v140, %v140
  %v150 = vmul.f32 %v149, -0.00019511016
  %v151 = vadd.f32 %v150, 0.008332121
  %v152 = vmul.f32 %v149, %v151
  %v153 = vadd.f32 %v152, -0.16666654
  %v154 = vmul.f32 %v149, %v153
  %v155 = vadd.f32 %v154, 1.0
  %v156 = vmul.f32 %v155, %v140
  %vm157 = vweird.f32 %v13
  %v158 = vand.u32 %v141, 3
  %vm159 = vcmp.lt.s32.totalorder %v158, 2
  %vm160 = vcmp.eq.s32.totalorder %v158, 0
  %v161 = vxor.u32 %v156, 2147483648
  %v162 = vsel %vm160, %v148, %v161
  %vm163 = vcmp.eq.s32.totalorder %v158, 2
  %v164 = vxor.u32 %v148, 2147483648
  %v165 = vsel %vm163, %v164, %v156
  %v166 = vsel %vm159, %v162, %v165
  %v167 = vsel %vm157, nan, %v166
  %v168 = vand.u32 2147483647, %v12
  %vm169 = vcmp.le.f32.partialorder %v168, 0.7853982
  %vm170 = vcmp.lt.s32.totalorder %v12, 0
  %v171 = vand.u32 %v12, 2139095040
  %v172 = vshrl.u32 %v171, 23
  %v173 = vsub.s32 %v172, 127
  %v174 = vand.u32 2147483647, %v12
  %v175 = vand.u32 %v174, 8388607
  %v176 = vor.u32 %v175, 8388608
  %v177 = vsub.s32 0, %v176
  %v178 = vadd.s32 %v173, 1
  %vm179 = vcmp.gt.s32.totalorder %v178, 0
  %v180 = vsel %vm179, %v178, 0
  %v181 = vshrl.u32 %v180, 5
  %v182 = vand.u32 %v180, 31
  %v183 = vsub.s32 32, %v182
  %v184 = vshrl.u32 683565275, %v183
  %v185 = vshll.u32 683565275, %v182
  %v186 = vshrl.u32 2475754826, %v183
  %v187 = vor.u32 %v185, %v186
  %v188 = vshll.u32 2475754826, %v182
  %v189 = vshrl.u32 2131351028, %v183
  %v190 = vor.u32 %v188, %v189
  %v191 = vshll.u32 2131351028, %v182
  %v192 = vshrl.u32 2102212464, %v183
  %v193 = vor.u32 %v191, %v192
  %v194 = vshll.u32 2102212464, %v182
  %v195 = vshrl.u32 920167782, %v183
  %v196 = vor.u32 %v194, %v195
  %v197 = vshll.u32 920167782, %v182
  %v198 = vshrl.u32 1326507024, %v183
  %v199 = vor.u32 %v197, %v198
  %vm200 = vcmp.lt.s32.totalorder %v181, 1
  %vm201 = vcmp.lt.s32.totalorder %v181, 2
  %vm202 = vcmp.lt.s32.totalorder %v181, 3
  %vm203 = vcmp.lt.s32.totalorder %v181, 4
  %v204 = vsel %vm200, %v184, %v187
  %v205 = vsel %vm203, %v193, 2102212464
  %v206 = vsel %vm202, %v190, %v205
  %v207 = vsel %vm201, %v204, %v206
  %v208 = vsel %vm200, %v187, %v190
  %v209 = vsel %vm203, %v196, 920167782
  %v210 = vsel %vm202, %v193, %v209
  %v211 = vsel %vm201, %v208, %v210
  %v212 = vsel %vm200, %v190, %v193
  %v213 = vsel %vm203, %v199, 1326507024
  %v214 = vsel %vm202, %v196, %v213
  %v215 = vsel %vm201, %v212, %v214
  %v216 = vshll.u32 %v176, 8
  %v217 = vand.u32 %v216, 65535
  %v218 = vshrl.u32 %v216, 16
  %v219 = vand.u32 %v215, 65535
  %v220 = vshrl.u32 %v215, 16
  %v221 = vmul.u32 %v217, %v219
  %v222 = vmul.u32 %v217, %v220
  %v223 = vmul.u32 %v218, %v219
  %v224 = vmul.u32 %v218, %v220
  %v225 = vshll.u32 %v222, 16
  %v226 = vshrl.u32 %v222, 16
  %v227 = vshll.u32 %v223, 16
  %v228 = vshrl.u32 %v223, 16
  %vm229 = vc.u32 %v221, %v225
  %v230 = vsel %vm229, 1, 0
  %v231 = vadd.s32 %v221, %v225
  %v232 = vadd.s32 %v224, %v230
  %vm233 = vc.u32 %v231, %v227
  %v234 = vsel %vm233, 1, 0
  %v235 = vadd.s32 %v231, %v227
  %v236 = vadd.s32 %v232, %v234
  %v237 = vadd.s32 %v236, %v226
  %v238 = vadd.s32 %v237, %v228
  %v239 = vand.u32 %v216, 65535
  %v240 = vshrl.u32 %v216, 16
  %v241 = vand.u32 %v211, 65535
  %v242 = vshrl.u32 %v211, 16
  %v243 = vmul.u32 %v239, %v241
  %v244 = vmul.u32 %v239, %v242
  %v245 = vmul.u32 %v240, %v241
  %v246 = vmul.u32 %v240, %v242
  %v247 = vshll.u32 %v244, 16
  %v248 = vshrl.u32 %v244, 16
  %v249 = vshll.u32 %v245, 16
  %v250 = vshrl.u32 %v245, 16
  %vm251 = vc.u32 %v243, %v247
  %v252 = vsel %vm251, 1, 0
  %v253 = vadd.s32 %v243, %v247
  %v254 = vadd.s32 %v246, %v252
  %vm255 = vc.u32 %v253, %v249
  %v256 = vsel %vm255, 1, 0
  %v257 = vadd.s32 %v253, %v249
  %v258 = vadd.s32 %v254, %v256
  %v259 = vadd.s32 %v258, %v248
  %v260 = vadd.s32 %v259, %v250
  %v261 = vmul.u32 %v216, %v207
  %v262 = vadd.s32 %v238, %v257
  %vm263 = vc.u32 %v238, %v257
  %v264 = vadd.s32 %v260, 1
  %v265 = vsel %vm263, %v264, %v260
  %v266 = vadd.s32 %v261, %v265
  %v267 = vadd.s32 %v266, 536870912
  %v268 = vshrl.u32 %v267, 30
  %v269 = vshll.u32 %v268, 30
  %v270 = vsub.s32 %v266, %v269
  %vm271 = vcmp.lt.s32.totalorder %v270, 0
  %v272 = vsub.s32 0, %v270
  %v273 = vsel %vm271, %v272, %v270
  %v274 = vclz %v273
  %v275 = vsub.s32 %v274, 2
  %vm276 = vcmp.gt.s32.totalorder 0, %v275
  %v277 = vsel %vm276, 0, %v275
  %v278 = vsub.s32 32, %v277
  %v279 = vshll.u32 %v270, %v277
  %v280 = vshrl.u32 %v262, %v278
  %v281 = vor.u32 %v279, %v280
  %v282 = vsub.s32 4294967266, %v277
  %v283 = vadd.s32 %v282, 127
  %v284 = vshll.u32 %v283, 23
  %v285 = vor.u32 4788187, %v284
  %v286 = vand.u32 2147483647, %v285
  %v288 = vcvt.s32.f32 %v281
  %v289 = vmul.f32 %v288, %v286
  %v290 = vxor.u32 %v289, 2147483648
  %v291 = vsel %vm170, %v290, %v289
  %v292 = vsub.s32 4, %v268
  %v293 = vsel %vm170, %v292, %v268
  %v294 = vsel %vm169, %v12, %v291
  %v295 = vsel %vm169, 0, %v293
  %v296 = vmul.f32 %v294, %v294
  %v297 = vmul.f32 %v296, -0.001358992
  %v298 = vadd.f32 %v297, 0.041655596
  %v299 = vmul.f32 %v296, %v298
  %v300 = vadd.f32 %v299, -0.4999988
  %v301 = vmul.f32 %v296, %v300
  %v302 = vadd.f32 1.0, %v301
  %v303 = vmul.f32 %v294, %v294
  %v304 = vmul.f32 %v303, -0.00019511016
  %v305 = vadd.f32 %v304, 0.008332121
  %v306 = vmul.f32 %v303, %v305
  %v307 = vadd.f32 %v306, -0.16666654
  %v308 = vmul.f32 %v303, %v307
  %v309 = vadd.f32 %v308, 1.0
  %v310 = vmul.f32 %v309, %v294
  %vm311 = vweird.f32 %v12
  %v312 = vand.u32 %v295, 3
  %vm313 = vcmp.lt.s32.totalorder %v312, 2
  %vm314 = vcmp.eq.s32.totalorder %v312, 0
  %v315 = vxor.u32 %v310, 2147483648
  %v316 = vsel %vm314, %v302, %v315
  %vm317 = vcmp.eq.s32.totalorder %v312, 2
  %v318 = vxor.u32 %v302, 2147483648
  %v319 = vsel %vm317, %v318, %v310
  %v320 = vsel %vm313, %v316, %v319
  %v321 = vsel %vm311, nan, %v320
  %v322 = vadd.f32 %v167, %v321
  %323 = vst [vmem:[%s2] sm:$0xff] %v322
  // Predicated region
  $region10: #{cos_energy.1} parent=0 // pred_check
    _
  $region11: #{cos_energy.1} parent=0 // pred_check_branch
    %325 = sbr.rel (0) target = $region13
  $region12: #{cos_energy.1} parent=0 // pred_region
    _
  $region13: #{cos_energy.1} parent=0 // pred_fallthru
    _
  // Predicated region
  $region14: #{cos_energy.1} parent=0 // pred_check
    _
  $region15: #{cos_energy.1} parent=0 // pred_check_branch
    %327 = sbr.rel (0) target = $region17
  $region16: #{cos_energy.1} parent=0 // pred_region
    _
  $region17: #{cos_energy.1} parent=0 // pred_fallthru
    _

</llo_original>
